<compile_context>
chip_gen: v7x
topology: tpu7x:2x2x1
jax: 0.10.0
libtpu: 0.0.40
codegen_flags: <defaults>
</compile_context>

<pallas_src>
import functools

import jax
import jax.numpy as jnp
from jax.experimental import pallas as pl
from jax.experimental.pallas import tpu as pltpu


_VMEM_LIMIT_BYTES = 32 * 1024 * 1024   # explicit; portable to v7x (64 MiB phys)
_TILE_VMEM_BUDGET = 24 * 1024 * 1024   # tiles + double-buffering stay under this


def _round_up(x, m):
    return ((x + m - 1) // m) * m


def _sublane_pad(rows, itemsize):
    # One vreg sublane holds 32 bits: f32 rows pad to 8, bf16 rows pad to 16.
    return _round_up(max(rows, 1), (8 * 4) // itemsize)


def _plan_tiles(N, C_in, C_out, L, in_bytes, out_bytes,
                vmem_budget=_TILE_VMEM_BUDGET, target_steps=8):
    """Pick (batch_block, spatial_tile) from a sublane-padded VMEM model."""
    l_pad = _round_up(L, 128)

    # Double-buffered weight + bias blocks (constant index_map, still 2 bufs).
    fixed = 2 * (_sublane_pad(C_out, in_bytes) * _round_up(C_in, 128) * in_bytes
                 + _sublane_pad(C_out, 4) * 128 * 4)
    # Double-buffered x + out blocks, per spatial column, per batch row.
    per_col = 2 * (_sublane_pad(C_in, in_bytes) * in_bytes
                   + _sublane_pad(C_out, out_bytes) * out_bytes)

    budget = max(vmem_budget - fixed, 128 * per_col)
    tile_l = min(l_pad, max(128, (budget // per_col) // 128 * 128))

    # v7x: keep >= target_steps grid steps so both TensorCores get work, but
    # never shrink a step below ~1 MiB of traffic (per-step overhead floor).
    if N * pl.cdiv(L, tile_l) < target_steps:
        shrunk = _round_up(pl.cdiv(l_pad, pl.cdiv(target_steps, N)), 128)
        if shrunk * per_col >= (1 << 20):
            tile_l = max(128, min(tile_l, shrunk))

    # Tiny problems: pack several batch rows per step to amortize the ~0.35 us
    # fixed per-step overhead (statically unrolled in the kernel -> keep small).
    bn = 1
    if pl.cdiv(L, tile_l) == 1 and tile_l * per_col < (2 << 20):
        bn = min(N, 16, max(1, (2 << 20) // max(1, tile_l * per_col)))
        if N >= target_steps:                    # don't starve v7x's 2nd core
            bn = min(bn, max(1, N // target_steps))
    return bn, tile_l


def _outconv_kernel(x_ref, w_ref, b_ref, o_ref, *, bn):
    # x_ref: (BN, C_in, TL)   w_ref: (C_out, C_in)   b_ref: (C_out, 1) f32
    # o_ref: (BN, C_out, TL)  -- TL is a multiple of 128 => lane-dense stores.
    w = w_ref[...]
    b = b_ref[...]
    for n in range(bn):                          # bn is static -> unrolled
        acc = jnp.dot(w, x_ref[n], preferred_element_type=jnp.float32)
        o_ref[n] = (acc + b).astype(o_ref.dtype)


def out_conv(x_nchw, weight, bias, *, compute_dtype=jnp.bfloat16,
             tile_l=None, batch_block=None):
    """1x1 conv (OutConv.forward).

    x_nchw : (N, C_in, H, W)
    weight : (C_out, C_in, 1, 1)   -- PyTorch Conv2d weight layout
    bias   : (C_out,)
    returns: (N, C_out, H, W) in x's dtype.
    """
    N, C_in, H, W = x_nchw.shape
    C_out = weight.shape[0]
    L = H * W
    out_dtype = x_nchw.dtype

    in_bytes = jnp.dtype(compute_dtype).itemsize
    out_bytes = jnp.dtype(out_dtype).itemsize

    bn_auto, tl_auto = _plan_tiles(N, C_in, C_out, L, in_bytes, out_bytes)
    bn = batch_block if batch_block is not None else bn_auto
    tl = tile_l if tile_l is not None else tl_auto

    # Free (contiguous) reshapes only -- no transposes.  The bf16 cast halves
    # HBM read traffic for this bandwidth-bound kernel (acc stays f32 inside).
    x_mat = x_nchw.reshape(N, C_in, L).astype(compute_dtype)
    w_mat = weight.reshape(C_out, C_in).astype(compute_dtype)
    b_mat = bias.reshape(C_out, 1).astype(jnp.float32)     # bias added in f32

    grid = (pl.cdiv(N, bn), pl.cdiv(L, tl))

    cost = pl.CostEstimate(
        flops=2 * N * L * C_in * C_out,
        bytes_accessed=(N * C_in * L * in_bytes + C_out * C_in * in_bytes
                        + C_out * 4 + N * C_out * L * out_bytes),
        transcendentals=0,
    )

    out_mat = pl.pallas_call(
        functools.partial(_outconv_kernel, bn=bn),
        out_shape=jax.ShapeDtypeStruct((N, C_out, L), out_dtype),
        grid_spec=pltpu.PrefetchScalarGridSpec(
            num_scalar_prefetch=0,
            grid=grid,
            in_specs=[
                pl.BlockSpec((bn, C_in, tl), lambda nb, lb: (nb, 0, lb)),
                pl.BlockSpec((C_out, C_in), lambda nb, lb: (0, 0)),
                pl.BlockSpec((C_out, 1), lambda nb, lb: (0, 0)),
            ],
            out_specs=pl.BlockSpec((bn, C_out, tl), lambda nb, lb: (nb, 0, lb)),
        ),
        compiler_params=pltpu.CompilerParams(
            dimension_semantics=("parallel", "parallel"),
            vmem_limit_bytes=_VMEM_LIMIT_BYTES),
        cost_estimate=cost,
    )(x_mat, w_mat, b_mat)

    # Free reshape back to NCHW.
    return out_mat.reshape(N, C_out, H, W)


if __name__ == "__main__":
    key = jax.random.PRNGKey(0)
    k_x, k_w, k_b = jax.random.split(key, 3)

    N, C_in, C_out, H, W = 2, 4, 3, 16, 16

    x = jax.random.normal(k_x, (N, C_in, H, W), dtype=jnp.float32)
    # Deterministic synthetic parameters (shapes match nn.Conv2d(C_in, C_out, 1)).
    weight = jax.random.normal(k_w, (C_out, C_in, 1, 1), dtype=jnp.float32) * 0.1
    bias = jax.random.normal(k_b, (C_out,), dtype=jnp.float32) * 0.1

    # Reference in plain JAX (same semantics as torch Conv2d with k=1).
    ref = (jnp.einsum("nchw,oc->nohw", x, weight.reshape(C_out, C_in))
           + bias.reshape(1, C_out, 1, 1))

    # Default bandwidth-optimized path: bf16 inputs, f32 accumulation.
    y = out_conv(x, weight, bias)
    jax.block_until_ready(y)
    assert y.shape == (N, C_out, H, W)
    assert jnp.allclose(y, ref, atol=2e-2, rtol=2e-2)

    # f32 path: matches the PyTorch module's default numerics tightly.
    y32 = out_conv(x, weight, bias, compute_dtype=jnp.float32)
    jax.block_until_ready(y32)
    assert jnp.allclose(y32, ref, atol=1e-5, rtol=1e-5)

    print("KERNEL_OK")
</pallas_src>

<mosaic_0001>
module attributes {stable_mosaic.version = 11 : i64} {
  func.func @_outconv_kernel(%arg0: i32, %arg1: i32, %arg2: memref<2x4x256xbf16, #tpu.memory_space<vmem>>, %arg3: memref<3x4xbf16, #tpu.memory_space<vmem>>, %arg4: memref<3x1xf32, #tpu.memory_space<vmem>>, %arg5: memref<2x3x256xf32, #tpu.memory_space<vmem>>) attributes {dimension_semantics = [#tpu.dimension_semantics<parallel>, #tpu.dimension_semantics<parallel>], iteration_bounds = array<i64: 1, 1>, scalar_prefetch = 0 : i64, scratch_operands = 0 : i64, tpu.core_type = #tpu.core_type<tc>, window_params = [{transform_indices = @transform_0, window_bounds = array<i64: 2, 4, 256>}, {pipeline_mode = #tpu.pipeline_mode<synchronous>, transform_indices = @transform_1, window_bounds = array<i64: 3, 4>}, {pipeline_mode = #tpu.pipeline_mode<synchronous>, transform_indices = @transform_2, window_bounds = array<i64: 3, 1>}, {transform_indices = @transform_3, window_bounds = array<i64: 2, 3, 256>}]} {
    %c0 = arith.constant 0 : index
    %c0_0 = arith.constant 0 : index
    %0 = vector.load %arg3[%c0, %c0_0] : memref<3x4xbf16, #tpu.memory_space<vmem>>, vector<3x4xbf16>
    %c0_1 = arith.constant 0 : index
    %c0_2 = arith.constant 0 : index
    %1 = vector.load %arg4[%c0_1, %c0_2] : memref<3x1xf32, #tpu.memory_space<vmem>>, vector<3x1xf32>
    %c0_3 = arith.constant 0 : index
    %c0_4 = arith.constant 0 : index
    %c0_5 = arith.constant 0 : index
    %2 = vector.load %arg2[%c0_3, %c0_4, %c0_5] : memref<2x4x256xbf16, #tpu.memory_space<vmem>>, vector<1x4x256xbf16>
    %3 = vector.shape_cast %2 : vector<1x4x256xbf16> to vector<4x256xbf16>
    %cst = arith.constant dense<0.000000e+00> : vector<3x256xf32>
    %4 = tpu.matmul %0, %3, %cst {dimension_numbers = #tpu.dot_dimension_numbers<[1], [0], [0], [1], [0, 0, 1, 1], [], []>} : vector<3x4xbf16>, vector<4x256xbf16>, vector<3x256xf32> -> vector<3x256xf32>
    %5 = vector.broadcast %1 : vector<3x1xf32> to vector<3x256xf32>
    %6 = arith.addf %4, %5 : vector<3x256xf32>
    %c0_6 = arith.constant 0 : index
    %c0_7 = arith.constant 0 : index
    %c0_8 = arith.constant 0 : index
    %7 = vector.load %arg5[%c0_6, %c0_7, %c0_8] : memref<2x3x256xf32, #tpu.memory_space<vmem>>, vector<1x3x256xf32>
    %8 = vector.shape_cast %7 : vector<1x3x256xf32> to vector<3x256xf32>
    %9 = vector.shape_cast %6 : vector<3x256xf32> to vector<1x3x256xf32>
    tpu.vector_store %arg5[%c0_6, %c0_7, %c0_8], %9 {strides = array<i32>} : memref<2x3x256xf32, #tpu.memory_space<vmem>>, vector<1x3x256xf32>,
    %c1 = arith.constant 1 : index
    %c0_9 = arith.constant 0 : index
    %c0_10 = arith.constant 0 : index
    %10 = vector.load %arg2[%c1, %c0_9, %c0_10] : memref<2x4x256xbf16, #tpu.memory_space<vmem>>, vector<1x4x256xbf16>
    %11 = vector.shape_cast %10 : vector<1x4x256xbf16> to vector<4x256xbf16>
    %cst_11 = arith.constant dense<0.000000e+00> : vector<3x256xf32>
    %12 = tpu.matmul %0, %11, %cst_11 {dimension_numbers = #tpu.dot_dimension_numbers<[1], [0], [0], [1], [0, 0, 1, 1], [], []>} : vector<3x4xbf16>, vector<4x256xbf16>, vector<3x256xf32> -> vector<3x256xf32>
    %13 = vector.broadcast %1 : vector<3x1xf32> to vector<3x256xf32>
    %14 = arith.addf %12, %13 : vector<3x256xf32>
    %c1_12 = arith.constant 1 : index
    %c0_13 = arith.constant 0 : index
    %c0_14 = arith.constant 0 : index
    %15 = vector.load %arg5[%c1_12, %c0_13, %c0_14] : memref<2x3x256xf32, #tpu.memory_space<vmem>>, vector<1x3x256xf32>
    %16 = vector.shape_cast %15 : vector<1x3x256xf32> to vector<3x256xf32>
    %17 = vector.shape_cast %14 : vector<3x256xf32> to vector<1x3x256xf32>
    tpu.vector_store %arg5[%c1_12, %c0_13, %c0_14], %17 {strides = array<i32>} : memref<2x3x256xf32, #tpu.memory_space<vmem>>, vector<1x3x256xf32>,
    return
  }
  func.func @transform_0(%arg0: i32, %arg1: i32) -> (i32, i32, i32) {
    %c0_i32 = arith.constant 0 : i32
    %c0_i32_0 = arith.constant 0 : i32
    return %arg0, %c0_i32, %arg1 : i32, i32, i32
  }
  func.func @transform_1(%arg0: i32, %arg1: i32) -> (i32, i32) {
    %c0_i32 = arith.constant 0 : i32
    %c0_i32_0 = arith.constant 0 : i32
    %c0_i32_1 = arith.constant 0 : i32
    return %c0_i32, %c0_i32_0 : i32, i32
  }
  func.func @transform_2(%arg0: i32, %arg1: i32) -> (i32, i32) {
    %c0_i32 = arith.constant 0 : i32
    %c0_i32_0 = arith.constant 0 : i32
    %c0_i32_1 = arith.constant 0 : i32
    return %c0_i32, %c0_i32_0 : i32, i32
  }
  func.func @transform_3(%arg0: i32, %arg1: i32) -> (i32, i32, i32) {
    %c0_i32 = arith.constant 0 : i32
    %c0_i32_0 = arith.constant 0 : i32
    return %arg0, %c0_i32, %arg1 : i32, i32, i32
  }
}

</mosaic_0001>

<llo_original>
// kernel: tpu_custom_call.1
$region0: #{tpu_custom_call.1}
  #allocation0 [shape = 'u32[]', space=smem, size = 0x4, offset = 0x4, fixed_abs, tag = 'smem constant byte address 0x4 - core index']
  #allocation1 [shape = 'u32[144,128]{1,0:T(1,128)}', space=vmem, size = 0x12000, scoped, tag = 'internal scratch']
  %s0 = inlined_call_operand.hbm [shape: bf16[2,4,256], index: 0, kind: input, shape index: {}]
  %s1 = inlined_call_operand.vmem [shape: bf16[3,4], index: 1, kind: input, shape index: {}]
  %s2 = inlined_call_operand.vmem [shape: f32[3,1], index: 2, kind: input, shape index: {}]
  %s3 = inlined_call_operand.vmem [shape: f32[2,3,256], index: 3, kind: output, shape index: {}]
  %s4 = sld [smem:[#allocation0]]
  $region26: #{tpu_custom_call.1} parent=0
    _
  %s6 = ssub.s32 1, %s4
  %s7 = scalar_select 0, %s6, %s4
  $region1: #{tpu_custom_call.1} parent=0
    #allocation2 [shape = 'u8[4096]{0}', space=vmem, size = 0x1000, scoped, tag = 'input window, operand 0, single buffered']
    #allocation3 [shape = 's32[1]{0}', space=sflag, size = 0x4, scoped, tag = 'scoped memory for tpu_custom_call.1']
    %8 = vsyncpa [#allocation3], 0
    // Predicated region
    $region2: #{tpu_custom_call.1} parent=1 // pred_check
      _
    $region3: #{tpu_custom_call.1} parent=1 // pred_check_branch
      %10 = sbr.rel (0) target = $region5
    $region4: #{tpu_custom_call.1} parent=1 // pred_region
      %s12 = ssub.s32 128, 128
      %13 = vsyncadd [#allocation3], %s12
      %s14 = sshll.u32 [#allocation2], 4
      %s15 = int_to_ptr.vmem [resolvable:$true] %s14
      %20 = dma.hbm_to_vmem [thread:$0]  %s0, 128, %s15, [#allocation3], 64, 64, 4
    $region5: #{tpu_custom_call.1} parent=1 // pred_fallthru
      _
    // Predicated region
    $region6: #{tpu_custom_call.1} parent=1 // pred_check
      _
    $region7: #{tpu_custom_call.1} parent=1 // pred_check_branch
      %22 = sbr.rel (0) target = $region9
    $region8: #{tpu_custom_call.1} parent=1 // pred_region
      _
    $region9: #{tpu_custom_call.1} parent=1 // pred_fallthru
      _
    // Predicated region
    $region10: #{tpu_custom_call.1} parent=1 // pred_check
      _
    $region11: #{tpu_custom_call.1} parent=1 // pred_check_branch
      %24 = sbr.rel (0) target = $region13
    $region12: #{tpu_custom_call.1} parent=1 // pred_region
      _
    $region13: #{tpu_custom_call.1} parent=1 // pred_fallthru
      _
    // Predicated region
    $region14: #{tpu_custom_call.1} parent=1 // pred_check
      _
    $region15: #{tpu_custom_call.1} parent=1 // pred_check_branch
      %26 = sbr.rel (0) target = $region17
    $region16: #{tpu_custom_call.1} parent=1 // pred_region
      %27 = dma.done [#allocation3], 128
    $region17: #{tpu_custom_call.1} parent=1 // pred_fallthru
      _
    %v29 = vld [vmem:[%s1] sm:$0x3]
    %v30 = vld [vmem:[%s2] sm:$0x7]
    %v31 = vld [vmem:[#allocation2] sm:$0xf]
    %33 = vset.pattern.permute.xlu0 0
    %34 = vperm.xlu0 %33, %v30
    %v35 = vpop.permute.xlu0 %34
    %v39 = vunpack.c.l.s4 1983009808
    %v40 = vunpack.c.0.s8 %v39
    %v41 = vlaneseq
    %v42 = vshrl.u32 %v41, 7
    %v43 = vsub.s32 %v40, %v42
    %v44 = vrot.slane %v31, %v43
    %v45 = vcombine.high %v44, %v44
    %vm46 = vcmask 31744
    %v48 = vsel %vm46, %v29, 0
    %vm50 = vcmask 1041408
    %v52 = vsel %vm50, %v44, 0
    %v55 = vsel %vm50, %v45, 0
    %57 = vmatprep.subr.bf16.mxu0 %v55
    %58 = vmatpush1.bf16.msra.mxu0 %v52
    %59 = vmatprep.subr.bf16.mxu0 0
    %60 = vmatpush1.bf16.msra.mxu0 0
    %61 = vmatprep.subr.bf16.mxu0 0
    %62 = vmatpush1.bf16.msra.mxu0 0
    %63 = vmatprep.subr.bf16.mxu0 0
    %64 = vmatpush1.bf16.msra.mxu0 0
    %65 = vmatprep.subr.bf16.mxu0 0
    %66 = vmatpush1.bf16.msra.mxu0 0
    %67 = vmatprep.subr.bf16.mxu0 0
    %68 = vmatpush1.bf16.msra.mxu0 0
    %69 = vmatprep.subr.bf16.mxu0 0
    %70 = vmatpush1.bf16.msra.mxu0 0
    %71 = vmatprep.subr.bf16.mxu0 0
    %72 = vmatpush1.bf16.msra.mxu0 0
    %73 = vmatprep.subr.bf16.mxu0 0
    %74 = vmatpush1.bf16.msra.mxu0 0
    %75 = vmatprep.subr.bf16.mxu0 0
    %76 = vmatpush1.bf16.msra.mxu0 0
    %77 = vmatprep.subr.bf16.mxu0 0
    %78 = vmatpush1.bf16.msra.mxu0 0
    %79 = vmatprep.subr.bf16.mxu0 0
    %80 = vmatpush1.bf16.msra.mxu0 0
    %81 = vmatprep.subr.bf16.mxu0 0
    %82 = vmatpush1.bf16.msra.mxu0 0
    %83 = vmatprep.subr.bf16.mxu0 0
    %84 = vmatpush1.bf16.msra.mxu0 0
    %85 = vmatprep.subr.bf16.mxu0 0
    %86 = vmatpush1.bf16.msra.mxu0 0
    %87 = vmatprep.subr.bf16.mxu0 0
    %88 = vmatpush1.bf16.msra.mxu0 0
    %89 = vmatprep.mubr.bf16.mxu0 0
    %90 = vmatmul.mubr.bf16.gmra.mrb[0].mxu0 %v48
    %v91 = vpop.f32.mrb[0].mxu0
    %v92 = vadd.f32 %v35, %v91
    %v93 = vpop.f32.mrb[0].mxu0
    %v94 = vadd.f32 %v35, %v93
    %v95 = vpop.f32.mrb[0].mxu0
    %v96 = vpop.f32.mrb[0].mxu0
    %97 = vdwg.mxu0
    %v100 = vcombine.low %v92, %v94
    %102 = vst [vmem:[%s3] sm:$0x77] %v100
    %s103 = scalar_lea.vmem [#allocation2], 4
    %v104 = vld [vmem:[%s103] sm:$0xf]
    %v107 = vunpack.c.l.s4 1983009808
    %v108 = vunpack.c.0.s8 %v107
    %v109 = vlaneseq
    %v110 = vshrl.u32 %v109, 7
    %v111 = vsub.s32 %v108, %v110
    %v112 = vrot.slane %v104, %v111
    %v113 = vcombine.high %v112, %v112
    %v115 = vsel %vm50, %v112, 0
    %v118 = vsel %vm50, %v113, 0
    %120 = vmatprep.subr.bf16.mxu0 %v118
    %121 = vmatpush1.bf16.msra.mxu0 %v115
    %122 = vmatprep.subr.bf16.mxu0 0
    %123 = vmatpush1.bf16.msra.mxu0 0
    %124 = vmatprep.subr.bf16.mxu0 0
    %125 = vmatpush1.bf16.msra.mxu0 0
    %126 = vmatprep.subr.bf16.mxu0 0
    %127 = vmatpush1.bf16.msra.mxu0 0
    %128 = vmatprep.subr.bf16.mxu0 0
    %129 = vmatpush1.bf16.msra.mxu0 0
    %130 = vmatprep.subr.bf16.mxu0 0
    %131 = vmatpush1.bf16.msra.mxu0 0
    %132 = vmatprep.subr.bf16.mxu0 0
    %133 = vmatpush1.bf16.msra.mxu0 0
    %134 = vmatprep.subr.bf16.mxu0 0
    %135 = vmatpush1.bf16.msra.mxu0 0
    %136 = vmatprep.subr.bf16.mxu0 0
    %137 = vmatpush1.bf16.msra.mxu0 0
    %138 = vmatprep.subr.bf16.mxu0 0
    %139 = vmatpush1.bf16.msra.mxu0 0
    %140 = vmatprep.subr.bf16.mxu0 0
    %141 = vmatpush1.bf16.msra.mxu0 0
    %142 = vmatprep.subr.bf16.mxu0 0
    %143 = vmatpush1.bf16.msra.mxu0 0
    %144 = vmatprep.subr.bf16.mxu0 0
    %145 = vmatpush1.bf16.msra.mxu0 0
    %146 = vmatprep.subr.bf16.mxu0 0
    %147 = vmatpush1.bf16.msra.mxu0 0
    %148 = vmatprep.subr.bf16.mxu0 0
    %149 = vmatpush1.bf16.msra.mxu0 0
    %150 = vmatprep.subr.bf16.mxu0 0
    %151 = vmatpush1.bf16.msra.mxu0 0
    %152 = vmatprep.mubr.bf16.mxu0 0
    %153 = vmatmul.mubr.bf16.gmra.mrb[0].mxu0 %v48
    %v154 = vpop.f32.mrb[0].mxu0
    %v155 = vadd.f32 %v35, %v154
    %v156 = vpop.f32.mrb[0].mxu0
    %v157 = vadd.f32 %v35, %v156
    %v158 = vpop.f32.mrb[0].mxu0
    %v159 = vpop.f32.mrb[0].mxu0
    %160 = vdwg.mxu0
    %v163 = vcombine.low %v155, %v157
    %s165 = scalar_lea.vmem %s3, 8
    %166 = vst [vmem:[%s165] sm:$0x77] %v163
    // Predicated region
    $region18: #{tpu_custom_call.1} parent=1 // pred_check
      _
    $region19: #{tpu_custom_call.1} parent=1 // pred_check_branch
      %168 = sbr.rel (0) target = $region21
    $region20: #{tpu_custom_call.1} parent=1 // pred_region
      _
    $region21: #{tpu_custom_call.1} parent=1 // pred_fallthru
      _
    // Predicated region
    $region22: #{tpu_custom_call.1} parent=1 // pred_check
      _
    $region23: #{tpu_custom_call.1} parent=1 // pred_check_branch
      %170 = sbr.rel (0) target = $region25
    $region24: #{tpu_custom_call.1} parent=1 // pred_region
      _
    $region25: #{tpu_custom_call.1} parent=1 // pred_fallthru
      _
    %171 = vsyncpa [#allocation3], 1

</llo_original>
